<compile_context>
chip_gen: v5e
topology: v5e:2x2
jax: 0.10.0
libtpu: 0.0.40
codegen_flags: <defaults>
</compile_context>

<pallas_src>
import functools

import jax
import jax.numpy as jnp
from jax import lax
from jax.experimental import pallas as pl
from jax.experimental.pallas import tpu as pltpu


def _round_up(x, m):
    return (x + m - 1) // m * m


def _contrastive_kernel(x0_ref, x1_ref, y_ref, out_ref, *,
                        margin, metric, inv_dim, batch, tile_b, needs_mask):
    # Inputs may be bf16/fp16; upcast in-kernel (v5e has no bf16 VALU).
    x0 = x0_ref[...].astype(jnp.float32)      # (TB, D)
    x1 = x1_ref[...].astype(jnp.float32)      # (TB, D)
    y = y_ref[...].astype(jnp.float32)        # (TB, 1)

    if metric == "l2":
        diff = x0 - x1
        dist_sq = jnp.sum(diff * diff, axis=-1, keepdims=True) * inv_dim  # (TB,1)
        dist = jnp.sqrt(dist_sq)                                          # (TB,1)
    elif metric == "cos":
        prod = jnp.sum(x0 * x1, axis=-1, keepdims=True)
        s0 = jnp.sum(x0 * x0, axis=-1, keepdims=True)
        s1 = jnp.sum(x1 * x1, axis=-1, keepdims=True)
        # prod / sqrt(s0*s1)  ->  prod * rsqrt(s0*s1)   (EUP, no VPU divide)
        dist = 1.0 - prod * lax.rsqrt(s0 * s1)
        dist_sq = dist * dist
    else:
        raise ValueError("Error Loss Metric!!")

    clamped = jnp.maximum(margin - dist, 0.0)                             # (TB,1)
    loss_rows = y * dist_sq + (1.0 - y) * (clamped * clamped)

    if needs_mask:
        # Only emitted when the last tile is partial: zero out-of-range rows so
        # the wrapper can blindly sum the loss column.
        row = (pl.program_id(0) * tile_b
               + lax.broadcasted_iota(jnp.int32, (tile_b, 1), 0))
        loss_rows = jnp.where(row < batch, loss_rows, 0.0)

    # Fused (TB, 3) output block -> a single writeback DMA per grid step.
    out_ref[:, 0:1] = dist_sq
    out_ref[:, 1:2] = clamped
    out_ref[:, 2:3] = loss_rows


def _vmem_budget_bytes():
    # Per-generation VMEM budget with headroom for compiler-internal scratch:
    #   v5e/v6e (128 MiB physical) -> ~102 MiB;  v7x (64 MiB / TC) -> ~51 MiB.
    try:
        cap = int(getattr(pltpu.get_tpu_info(), "vmem_capacity_bytes", 64 << 20))
    except Exception:
        cap = 64 << 20  # conservative (v7x-sized) fallback
    return max(int(cap * 0.8), 32 << 20)


def contrastive_loss(x0, x1, y, *, margin=1.0, metric="l2", block_b=2048):
    """Pallas implementation of ContrastiveLoss.forward.

    Returns (loss: scalar, dist_sq: (B,), dist: (B,)) matching the PyTorch module
    (the returned `dist` is the clamped margin - distance, as in the reference).
    """
    assert metric in ("l2", "cos"), "Error Loss Metric!!"
    assert x0.ndim == 2 and x1.ndim == 2 and y.ndim == 1
    assert x0.shape == x1.shape and x0.shape[0] == y.shape[0] and x0.shape[0] > 0
    B, D = x0.shape

    # Big inputs stay in their native dtype; only the tiny y vector is converted.
    itemsize = jnp.dtype(x0.dtype).itemsize
    y2d = y.astype(jnp.float32).reshape(B, 1)

    # ---- tile sizing from the per-generation VMEM budget ---------------------
    budget = _vmem_budget_bytes()
    usable = max(budget - (4 << 20), 8 << 20)      # slack for y/out bufs + misc
    # Double-buffered inputs dominate: 2 arrays x 2 buffers x tb x D x itemsize.
    per_row = 2 * 2 * D * itemsize + 2 * 1 * 4 + 2 * 3 * 4
    max_tb = max(8, (usable // per_row) // 8 * 8)
    # TODO(synk): for huge D where even tb=8 exceeds the budget, add a second
    # "arbitrary" grid axis over D accumulating partial sums in a (tb,1) scratch.

    # Aim for >= 2 grid steps so the parallel axis shards across both v7x TCs
    # (on single-TC v5e/v6e the extra step costs ~0.35us, negligible).
    split_target = _round_up(max(pl.cdiv(B, 2), 8), 8)
    tb = max(8, min(block_b, max_tb, split_target))

    num_tiles = pl.cdiv(B, tb)
    needs_mask = (num_tiles * tb) != B

    vmem_need = (2 * 2 * tb * D * itemsize      # double-buffered x0/x1 tiles
                 + 2 * tb * 4                   # y tiles
                 + 2 * tb * 3 * 4               # fused output tiles
                 + (2 << 20))                   # misc headroom
    vmem_limit = int(min(budget, max(vmem_need, 32 << 20)))

    kernel = functools.partial(
        _contrastive_kernel, margin=float(margin), metric=metric,
        inv_dim=1.0 / float(D), batch=B, tile_b=tb, needs_mask=needs_mask)

    fused = pl.pallas_call(
        kernel,
        out_shape=jax.ShapeDtypeStruct((B, 3), jnp.float32),
        grid_spec=pltpu.PrefetchScalarGridSpec(
            num_scalar_prefetch=0,
            grid=(num_tiles,),
            in_specs=[
                pl.BlockSpec((tb, D), lambda i: (i, 0)),
                pl.BlockSpec((tb, D), lambda i: (i, 0)),
                pl.BlockSpec((tb, 1), lambda i: (i, 0)),
            ],
            out_specs=pl.BlockSpec((tb, 3), lambda i: (i, 0)),
        ),
        compiler_params=pltpu.CompilerParams(
            dimension_semantics=("parallel",),
            vmem_limit_bytes=vmem_limit),
    )(x0, x1, y2d)

    # Tiny final reduction in the wrapper keeps the grid axis fully parallel.
    loss = jnp.sum(fused[:, 2]) * (0.5 / float(B))
    return loss, fused[:, 0], fused[:, 1]


def _reference(x0, x1, y, margin=1.0, metric="l2"):
    # Pure-JAX reference mirroring the PyTorch code.
    x0 = x0.astype(jnp.float32)
    x1 = x1.astype(jnp.float32)
    y = y.astype(jnp.float32)
    if metric == "l2":
        diff = x0 - x1
        dist_sq = jnp.sum(diff ** 2, axis=1) / x0.shape[-1]
        dist = jnp.sqrt(dist_sq)
    else:  # cos
        prod = jnp.sum(x0 * x1, -1)
        dist = 1 - prod / jnp.sqrt(jnp.sum(x0 ** 2, 1) * jnp.sum(x1 ** 2, 1))
        dist_sq = dist ** 2
    mdist = margin - dist
    dist = jnp.maximum(mdist, 0.0)
    loss = jnp.sum(y * dist_sq + (1 - y) * dist ** 2) / 2.0 / x0.shape[0]
    return loss, dist_sq, dist


if __name__ == "__main__":
    key = jax.random.PRNGKey(0)
    k0, k1, ky = jax.random.split(key, 3)

    ok = True
    # (B, D, dtype): single-tile exact case, a partial/masked last-tile case,
    # a multi-tile case, and a native-bf16 case (upcast happens in-kernel).
    cases = (
        (8, 32, jnp.float32),
        (10, 32, jnp.float32),
        (300, 32, jnp.float32),
        (300, 64, jnp.bfloat16),
    )
    for (B, D, dt) in cases:
        x0 = jax.random.normal(jax.random.fold_in(k0, B * D), (B, D),
                               dtype=jnp.float32).astype(dt)
        x1 = jax.random.normal(jax.random.fold_in(k1, B * D), (B, D),
                               dtype=jnp.float32).astype(dt)
        y = jax.random.bernoulli(jax.random.fold_in(ky, B * D), 0.5,
                                 (B,)).astype(jnp.float32)

        for metric in ("l2", "cos"):
            loss, dist_sq, dist = contrastive_loss(
                x0, x1, y, margin=1.0, metric=metric)
            jax.block_until_ready((loss, dist_sq, dist))
            rl, rds, rd = _reference(x0, x1, y, margin=1.0, metric=metric)
            ok &= bool(jnp.allclose(loss, rl, atol=2e-5))
            ok &= bool(jnp.allclose(dist_sq, rds, atol=2e-5))
            ok &= bool(jnp.allclose(dist, rd, atol=2e-5))

    if ok:
        print("KERNEL_OK")
    else:
        print("KERNEL_MISMATCH")
</pallas_src>

<mosaic_0001>
module attributes {stable_mosaic.version = 11 : i64} {
  func.func @_contrastive_kernel(%arg0: i32, %arg1: memref<8x32xf32, #tpu.memory_space<vmem>>, %arg2: memref<8x32xf32, #tpu.memory_space<vmem>>, %arg3: memref<8x1xf32, #tpu.memory_space<vmem>>, %arg4: memref<8x3xf32, #tpu.memory_space<vmem>>) attributes {dimension_semantics = [#tpu.dimension_semantics<parallel>], iteration_bounds = array<i64: 1>, scalar_prefetch = 0 : i64, scratch_operands = 0 : i64, tpu.core_type = #tpu.core_type<tc>, window_params = [{transform_indices = @transform_0, window_bounds = array<i64: 8, 32>}, {transform_indices = @transform_1, window_bounds = array<i64: 8, 32>}, {transform_indices = @transform_2, window_bounds = array<i64: 8, 1>}, {transform_indices = @transform_3, window_bounds = array<i64: 8, 3>}]} {
    %c0 = arith.constant 0 : index
    %c0_0 = arith.constant 0 : index
    %0 = vector.load %arg1[%c0, %c0_0] : memref<8x32xf32, #tpu.memory_space<vmem>>, vector<8x32xf32>
    %c0_1 = arith.constant 0 : index
    %c0_2 = arith.constant 0 : index
    %1 = vector.load %arg2[%c0_1, %c0_2] : memref<8x32xf32, #tpu.memory_space<vmem>>, vector<8x32xf32>
    %c0_3 = arith.constant 0 : index
    %c0_4 = arith.constant 0 : index
    %2 = vector.load %arg3[%c0_3, %c0_4] : memref<8x1xf32, #tpu.memory_space<vmem>>, vector<8x1xf32>
    %3 = arith.subf %0, %1 : vector<8x32xf32>
    %4 = arith.mulf %3, %3 : vector<8x32xf32>
    %cst = arith.constant dense<0.000000e+00> : vector<8xf32>
    %5 = vector.multi_reduction <add>, %4, %cst [1] : vector<8x32xf32> to vector<8xf32>
    %6 = vector.shape_cast %5 : vector<8xf32> to vector<8x1xf32>
    %cst_5 = arith.constant 3.125000e-02 : f32
    %7 = vector.broadcast %cst_5 : f32 to vector<8x1xf32>
    %8 = arith.mulf %6, %7 : vector<8x1xf32>
    %9 = math.sqrt %8 : vector<8x1xf32>
    %cst_6 = arith.constant 1.000000e+00 : f32
    %10 = vector.broadcast %cst_6 : f32 to vector<8x1xf32>
    %11 = arith.subf %10, %9 : vector<8x1xf32>
    %cst_7 = arith.constant 0.000000e+00 : f32
    %12 = vector.broadcast %cst_7 : f32 to vector<8x1xf32>
    %13 = arith.maximumf %11, %12 : vector<8x1xf32>
    %14 = arith.mulf %2, %8 : vector<8x1xf32>
    %cst_8 = arith.constant 1.000000e+00 : f32
    %15 = vector.broadcast %cst_8 : f32 to vector<8x1xf32>
    %16 = arith.subf %15, %2 : vector<8x1xf32>
    %17 = arith.mulf %13, %13 : vector<8x1xf32>
    %18 = arith.mulf %16, %17 : vector<8x1xf32>
    %19 = arith.addf %14, %18 : vector<8x1xf32>
    %c0_9 = arith.constant 0 : index
    %c0_10 = arith.constant 0 : index
    %20 = vector.load %arg4[%c0_9, %c0_10] : memref<8x3xf32, #tpu.memory_space<vmem>>, vector<8x1xf32>
    tpu.vector_store %arg4[%c0_9, %c0_10], %8 {strides = array<i32>} : memref<8x3xf32, #tpu.memory_space<vmem>>, vector<8x1xf32>,
    %c0_11 = arith.constant 0 : index
    %c1 = arith.constant 1 : index
    %21 = vector.load %arg4[%c0_11, %c1] : memref<8x3xf32, #tpu.memory_space<vmem>>, vector<8x1xf32>
    tpu.vector_store %arg4[%c0_11, %c1], %13 {strides = array<i32>} : memref<8x3xf32, #tpu.memory_space<vmem>>, vector<8x1xf32>,
    %c0_12 = arith.constant 0 : index
    %c2 = arith.constant 2 : index
    %22 = vector.load %arg4[%c0_12, %c2] : memref<8x3xf32, #tpu.memory_space<vmem>>, vector<8x1xf32>
    tpu.vector_store %arg4[%c0_12, %c2], %19 {strides = array<i32>} : memref<8x3xf32, #tpu.memory_space<vmem>>, vector<8x1xf32>,
    return
  }
  func.func @transform_0(%arg0: i32) -> (i32, i32) {
    %c0_i32 = arith.constant 0 : i32
    %c0_i32_0 = arith.constant 0 : i32
    return %arg0, %c0_i32 : i32, i32
  }
  func.func @transform_1(%arg0: i32) -> (i32, i32) {
    %c0_i32 = arith.constant 0 : i32
    %c0_i32_0 = arith.constant 0 : i32
    return %arg0, %c0_i32 : i32, i32
  }
  func.func @transform_2(%arg0: i32) -> (i32, i32) {
    %c0_i32 = arith.constant 0 : i32
    %c0_i32_0 = arith.constant 0 : i32
    return %arg0, %c0_i32 : i32, i32
  }
  func.func @transform_3(%arg0: i32) -> (i32, i32) {
    %c0_i32 = arith.constant 0 : i32
    %c0_i32_0 = arith.constant 0 : i32
    return %arg0, %c0_i32 : i32, i32
  }
}

</mosaic_0001>

<llo_original>
// kernel: tpu_custom_call.1
$region0: #{tpu_custom_call.1}
  #allocation0 [shape = 'u32[]', space=smem, size = 0x4, offset = 0x4, fixed_abs, tag = 'smem constant byte address 0x4 - core index']
  #allocation1 [shape = 'u32[72,128]{1,0:T(1,128)}', space=vmem, size = 0x9000, scoped, tag = 'internal scratch']
  %s0 = inlined_call_operand.vmem [shape: f32[8,32], index: 0, kind: input, shape index: {}]
  %s1 = inlined_call_operand.hbm [shape: f32[8,32], index: 1, kind: input, shape index: {}]
  %s2 = inlined_call_operand.vmem [shape: f32[8,1], index: 2, kind: input, shape index: {}]
  %s3 = inlined_call_operand.vmem [shape: f32[8,3], index: 3, kind: output, shape index: {}]
  %s4 = sld [smem:[#allocation0]]
  $region26: #{tpu_custom_call.1} parent=0
    _
  %s6 = ssub.s32 1, %s4
  %s7 = scalar_select 0, %s6, %s4
  $region1: #{tpu_custom_call.1} parent=0
    #allocation2 [shape = 'u8[4096]{0}', space=vmem, size = 0x1000, scoped, tag = 'input window, operand 1, single buffered']
    #allocation3 [shape = 's32[1]{0}', space=sflag, size = 0x4, scoped, tag = 'scoped memory for tpu_custom_call.1']
    %8 = vsyncpa [#allocation3], 0
    // Predicated region
    $region2: #{tpu_custom_call.1} parent=1 // pred_check
      _
    $region3: #{tpu_custom_call.1} parent=1 // pred_check_branch
      %10 = sbr.rel (0) target = $region5
    $region4: #{tpu_custom_call.1} parent=1 // pred_region
      _
    $region5: #{tpu_custom_call.1} parent=1 // pred_fallthru
      _
    // Predicated region
    $region6: #{tpu_custom_call.1} parent=1 // pred_check
      _
    $region7: #{tpu_custom_call.1} parent=1 // pred_check_branch
      %12 = sbr.rel (0) target = $region9
    $region8: #{tpu_custom_call.1} parent=1 // pred_region
      %14 = vsyncadd [#allocation3], 0
      %s16 = sshll.u32 %s1, 4
      %s17 = int_to_ptr.hbm [resolvable:$true] %s16
      %s18 = sshll.u32 [#allocation2], 4
      %s19 = int_to_ptr.vmem [resolvable:$true] %s18
      %21 = dma.hbm_to_vmem [thread:$0]  %s17, 128, %s19, [#allocation3]
    $region9: #{tpu_custom_call.1} parent=1 // pred_fallthru
      _
    // Predicated region
    $region10: #{tpu_custom_call.1} parent=1 // pred_check
      _
    $region11: #{tpu_custom_call.1} parent=1 // pred_check_branch
      %23 = sbr.rel (0) target = $region13
    $region12: #{tpu_custom_call.1} parent=1 // pred_region
      _
    $region13: #{tpu_custom_call.1} parent=1 // pred_fallthru
      _
    // Predicated region
    $region14: #{tpu_custom_call.1} parent=1 // pred_check
      _
    $region15: #{tpu_custom_call.1} parent=1 // pred_check_branch
      %25 = sbr.rel (0) target = $region17
    $region16: #{tpu_custom_call.1} parent=1 // pred_region
      %27 = dma.done [#allocation3], 128
    $region17: #{tpu_custom_call.1} parent=1 // pred_fallthru
      _
    %v28 = vld [vmem:[%s0] sm:$0xff]
    %v29 = vld [vmem:[#allocation2] sm:$0xff]
    %v30 = vld [vmem:[%s2] sm:$0xff]
    %v31 = vsub.f32 %v28, %v29
    %v32 = vmul.f32 %v31, %v31
    %vm33 = vcmask 261120
    %v34 = vsel %vm33, %v32, 0.0
    %35 = vadd.xlane.f32.xlu0 %v34
    %v36 = vpop.xlane.xlu0 %35
    %v37 = vmul.f32 %v36, 0.03125
    %v38 = vrsqrt.pop %v37
    %v39 = vmul.f32 %v38, %v37
    %v40 = vmul.f32 %v39, %v38
    %v41 = vmul.f32 0.5, %v40
    %v42 = vsub.f32 1.5, %v41
    %v43 = vmul.f32 %v38, %v42
    %v44 = vmul.f32 %v37, %v43
    %vm45 = vcmp.eq.f32.partialorder %v37, inf
    %v46 = vsel %vm45, %v37, %v44
    %vm47 = vcmp.eq.f32.partialorder %v37, 0.0
    %v48 = vand.u32 %v37, 2147483648
    %v49 = vsel %vm47, %v48, %v46
    %v50 = vsub.f32 1.0, %v49
    %v51 = vmax.f32 %v50, 0.0
    %v52 = vmul.f32 %v30, %v37
    %v53 = vsub.f32 1.0, %v30
    %v54 = vmul.f32 %v51, %v51
    %v55 = vmul.f32 %v53, %v54
    %v56 = vadd.f32 %v52, %v55
    %vm57 = vcmask 7168
    %58 = vst.msk [vmem:[%s3] sm:$0xff] %vm57, %v37
    %vm59 = vcmask 15368
    %60 = vst.msk [vmem:[%s3] sm:$0xff] %vm59, %v51
    %62 = vrot.lane.b32.xlu0 %v56, 2
    %v63 = vpop.permute.xlu0 %62
    %vm65 = vcmask 23568
    %66 = vst.msk [vmem:[%s3] sm:$0xff] %vm65, %v63
    // Predicated region
    $region18: #{tpu_custom_call.1} parent=1 // pred_check
      _
    $region19: #{tpu_custom_call.1} parent=1 // pred_check_branch
      %68 = sbr.rel (0) target = $region21
    $region20: #{tpu_custom_call.1} parent=1 // pred_region
      _
    $region21: #{tpu_custom_call.1} parent=1 // pred_fallthru
      _
    // Predicated region
    $region22: #{tpu_custom_call.1} parent=1 // pred_check
      _
    $region23: #{tpu_custom_call.1} parent=1 // pred_check_branch
      %70 = sbr.rel (0) target = $region25
    $region24: #{tpu_custom_call.1} parent=1 // pred_region
      _
    $region25: #{tpu_custom_call.1} parent=1 // pred_fallthru
      _
    %71 = vsyncpa [#allocation3], 1

</llo_original>
